<compile_context>
chip_gen: v6e
topology: v6e:2x2x1
jax: 0.10.0
libtpu: 0.0.40
codegen_flags: <defaults>
</compile_context>

<pallas_src>
import functools

import jax
import jax.numpy as jnp
from jax import lax
from jax.experimental import pallas as pl
from jax.experimental.pallas import tpu as pltpu

LANE = 128        # vreg lane width (last dim)
SUBLANE = 8       # f32 vreg sublane count (second-to-last dim)
_MAX_UNROLLED_LAYERS = 4


def _round_up(n, m):
    return ((n + m - 1) // m) * m


def _cdiv(a, b):
    return (a + b - 1) // b


def _vmem_capacity_bytes():
    """Physical VMEM per core; conservative 64 MiB (v7x) if the query fails."""
    try:
        return int(pltpu.get_tpu_info().vmem_capacity_bytes)
    except Exception:
        return 64 << 20


def _vmem_array_bytes(shape, dtype):
    """VMEM footprint of one buffer of `shape` (last two dims tile-padded)."""
    itemsize = jnp.dtype(dtype).itemsize
    s = list(shape)
    s[-1] = _round_up(s[-1], LANE)
    if len(s) >= 2:
        s[-2] = _round_up(s[-2], 32 // itemsize)     # 8 sublanes x dtype packing
    n = 1
    for d in s:
        n *= d
    return n * itemsize


# ---------------------------------------------------------------------------
# Kernel
# ---------------------------------------------------------------------------
def qnet_kernel(n_layers, xac_ref, wc_ref, bc_ref, wh_ref, bh_ref,
                wo_ref, bo_ref, out_ref):
    """One batch tile of the full QNet MLP (all refs are VMEM tiles).

    xac_ref: (tm, S+A)                        concatenated state||action tile
    wc_ref : (S+A, Hp), bc_ref: (1, Hp)       combine layer
    wh_ref : (L, Hp, Hp), bh_ref: (L, 1, Hp)  hidden stack (resident)
    wo_ref : (Hp, Op),  bo_ref: (1, Op)       output layer
    out_ref: (tm, Op)
    """
    cdt = wc_ref.dtype   # compute/epilogue dtype (f32, or bf16 on v6e/v7x)

    # combine_layer + ReLU.  MXU accumulates in f32; the bias-add/ReLU epilogue
    # runs in the compute dtype (bf16 epilogue halves per-element VALU work).
    h = jnp.dot(xac_ref[...], wc_ref[...], preferred_element_type=jnp.float32)
    h = jnp.maximum(h.astype(cdt) + bc_ref[...], 0)

    def layer(i, h):
        acc = jnp.dot(h, wh_ref[i], preferred_element_type=jnp.float32)
        return jnp.maximum(acc.astype(cdt) + bh_ref[i], 0)

    if n_layers <= _MAX_UNROLLED_LAYERS:
        for i in range(n_layers):            # small static stack: unrolled
            h = layer(i, h)
    else:
        # Deep stacks: fori_loop bounds vreg live ranges / code size.
        h = lax.fori_loop(0, n_layers, layer, h, unroll=2)

    out = jnp.dot(h, wo_ref[...], preferred_element_type=jnp.float32)
    out = out + bo_ref[...].astype(jnp.float32)
    # output_activation is None -> identity.  Full-lane (Op % 128 == 0) store;
    # emitted in the compute dtype to halve HBM writeback on the bf16 path.
    out_ref[...] = out.astype(out_ref.dtype)


# ---------------------------------------------------------------------------
# Parameter preparation (one-time, outside the hot path)
# ---------------------------------------------------------------------------
def prepare_params(params, *, compute_dtype=jnp.float32):
    """Pad hidden/output feature dims to multiples of 128 lanes and cast.

    Zero padding is exact: padded hidden lanes stay 0 through ReLU and
    contribute nothing downstream; padded output lanes are sliced off by the
    wrapper.  bf16 weights halve VMEM/DMA bytes and use the native MXU bf16
    path on v6e/v7x (accumulation stays f32 inside the kernel).
    """
    wc, bc, wh, bh, wo, bo = params
    hidden = wc.shape[1]
    output_size = wo.shape[1]
    h_pad = _round_up(hidden, LANE)
    o_pad = _round_up(output_size, LANE)
    dh, do = h_pad - hidden, o_pad - output_size

    wc_p = jnp.pad(wc, ((0, 0), (0, dh))).astype(compute_dtype)
    bc_p = jnp.pad(bc, ((0, 0), (0, dh))).astype(compute_dtype)
    wh_p = jnp.pad(wh, ((0, 0), (0, dh), (0, dh))).astype(compute_dtype)
    bh_p = jnp.pad(bh, ((0, 0), (0, 0), (0, dh))).astype(compute_dtype)
    wo_p = jnp.pad(wo, ((0, dh), (0, do))).astype(compute_dtype)
    bo_p = jnp.pad(bo, ((0, 0), (0, do))).astype(compute_dtype)
    return (wc_p, bc_p, wh_p, bh_p, wo_p, bo_p), output_size


# ---------------------------------------------------------------------------
# Forward wrapper
# ---------------------------------------------------------------------------
@functools.partial(
    jax.jit,
    static_argnames=("n_layers", "output_size", "tm", "b_pad", "vmem_limit",
                     "single_buffer_weights"))
def _qnet_forward_impl(x, ac, padded_params, *, n_layers, output_size, tm,
                       b_pad, vmem_limit, single_buffer_weights):
    wc, bc, wh, bh, wo, bo = padded_params
    batch = x.shape[0]
    sa = x.shape[1] + ac.shape[1]
    h_pad = wc.shape[1]
    o_pad = wo.shape[1]
    cdt = wc.dtype

    # Tiny (B, S+A) concat in the wrapper -> single merged combine matmul.
    xac = jnp.concatenate([x.astype(cdt), ac.astype(cdt)], axis=1)
    xac = jnp.pad(xac, ((0, b_pad - batch), (0, 0)))

    grid = (b_pad // tm,)

    def resident(shape):
        # Weight/bias blocks never change across the batch grid; request a
        # single pipeline buffer so the resident stack is not silently
        # double-buffered.
        n = len(shape)
        idx = lambda i: (0,) * n
        if single_buffer_weights:
            return pl.BlockSpec(shape, idx, pipeline_mode=pl.Buffered(1))
        return pl.BlockSpec(shape, idx)

    out = pl.pallas_call(
        functools.partial(qnet_kernel, n_layers),
        out_shape=jax.ShapeDtypeStruct((b_pad, o_pad), cdt),
        grid=grid,
        in_specs=[
            pl.BlockSpec((tm, sa), lambda i: (i, 0)),   # xac tile (streamed)
            resident((sa, h_pad)),                      # Wc
            resident((1, h_pad)),                       # bc
            resident((n_layers, h_pad, h_pad)),         # hidden weights
            resident((n_layers, 1, h_pad)),             # hidden biases
            resident((h_pad, o_pad)),                   # Wo
            resident((1, o_pad)),                       # bo
        ],
        out_specs=pl.BlockSpec((tm, o_pad), lambda i: (i, 0)),
        compiler_params=pltpu.CompilerParams(
            dimension_semantics=("parallel",),   # v7x: shard batch over 2 TCs
            vmem_limit_bytes=vmem_limit,
        ),
    )(xac, wc, bc, wh, bh, wo, bo)

    return out[:batch, :output_size].astype(jnp.float32)


_SINGLE_BUFFER_WEIGHTS_OK = [True]   # flipped off if pl.Buffered(1) is rejected


def qnet_forward(x, ac, padded_params, n_layers, output_size):
    """Choose batch tiling / VMEM budget, then run the fused MLP kernel."""
    wc, bc, wh, bh, wo, bo = padded_params
    batch = x.shape[0]
    sa = x.shape[1] + ac.shape[1]
    h_pad = wc.shape[1]
    o_pad = wo.shape[1]
    csize = jnp.dtype(wc.dtype).itemsize

    vmem_cap = _vmem_capacity_bytes()

    # Resident weight stack, counted double-buffered to stay conservative if
    # the single-buffer request is unavailable on this jax version.
    resident_bytes = 2 * sum(_vmem_array_bytes(a.shape, a.dtype)
                             for a in (wc, bc, wh, bh, wo, bo))

    # Per-batch-row VMEM cost: lane-padded input tile + output tile (both
    # double-buffered by the pipeline) + live activations / f32 accumulator.
    per_row = (2 * _round_up(sa, LANE) * csize
               + 2 * o_pad * csize
               + 2 * h_pad * (4 + csize))

    budget = int(0.75 * vmem_cap)
    spare = budget - resident_bytes - (2 << 20)        # ~2 MiB internal scratch
    # TODO(synk): add a layer-streaming fallback (grid axis over layers with
    # (1, Hp, Hp) weight blocks and pl.when-gated combine/output stages) for
    # stacks whose resident weights exceed the per-core VMEM budget (v7x).
    tm_vmem = max(SUBLANE, (spare // per_row) // SUBLANE * SUBLANE)

    # Batch tile cap: big tiles amortize the ~0.35 us per-grid-step overhead on
    # v5e/v6e's 128 MiB VMEM; keep 512 on v7x's 64 MiB VMEM.
    cap = 1024 if vmem_cap >= (96 << 20) else 512

    b_al = _round_up(max(batch, 1), SUBLANE)
    tm_candidate = min(cap, tm_vmem, b_al)
    if b_al <= tm_candidate:
        # Split even medium batches in two so v7x's second TensorCore is not
        # idle; one extra grid step is noise on single-TC v5e/v6e.
        n_tiles = 2 if b_al >= 256 else 1
    else:
        n_tiles = _cdiv(b_al, tm_candidate)
        if n_tiles % 2:
            n_tiles += 1                 # balanced tile count for 2 TensorCores
    tm = _round_up(_cdiv(b_al, n_tiles), SUBLANE)
    b_pad = tm * n_tiles

    # Always set the scoped-VMEM limit (v5e's default is only 16 MiB) and clamp
    # it to the physical per-core budget (64 MiB on v7x).
    est = resident_bytes + tm * per_row + (2 << 20)
    vmem_limit = int(min(max(2 * est, 32 << 20), int(0.9 * vmem_cap)))

    kwargs = dict(n_layers=n_layers, output_size=output_size, tm=tm,
                  b_pad=b_pad, vmem_limit=vmem_limit)
    if _SINGLE_BUFFER_WEIGHTS_OK[0]:
        try:
            return _qnet_forward_impl(x, ac, padded_params,
                                      single_buffer_weights=True, **kwargs)
        except Exception:
            # pl.Buffered(1) unsupported here: fall back to default
            # (double-buffered) resident weight specs; VMEM estimate already
            # accounts for the 2x footprint.
            _SINGLE_BUFFER_WEIGHTS_OK[0] = False
    return _qnet_forward_impl(x, ac, padded_params,
                              single_buffer_weights=False, **kwargs)


# ---------------------------------------------------------------------------
# Reference + synthetic init
# ---------------------------------------------------------------------------
def init_params(key, state_size, action_size, hidden_size, output_size,
                n_layers):
    """Deterministic synthetic init; weights stored as (in, out) = W^T."""
    ks = jax.random.split(key, 6)
    in_dim = state_size + action_size
    wc = 0.1 * jax.random.normal(ks[0], (in_dim, hidden_size), jnp.float32)
    bc = 0.1 * jax.random.normal(ks[1], (1, hidden_size), jnp.float32)
    wh = 0.1 * jax.random.normal(ks[2], (n_layers, hidden_size, hidden_size),
                                 jnp.float32)
    bh = 0.1 * jax.random.normal(ks[3], (n_layers, 1, hidden_size),
                                 jnp.float32)
    wo = 0.1 * jax.random.normal(ks[4], (hidden_size, output_size),
                                 jnp.float32)
    bo = 0.1 * jax.random.normal(ks[5], (1, output_size), jnp.float32)
    return wc, bc, wh, bh, wo, bo


def qnet_reference(x, ac, params, n_layers):
    """Pure-JAX f32 reference mirroring the PyTorch forward."""
    wc, bc, wh, bh, wo, bo = params
    hp = lax.Precision.HIGHEST
    h = jnp.dot(jnp.concatenate([x, ac], axis=1), wc, precision=hp) + bc
    h = jnp.maximum(h, 0.0)
    for i in range(n_layers):
        h = jnp.maximum(jnp.dot(h, wh[i], precision=hp) + bh[i], 0.0)
    return jnp.dot(h, wo, precision=hp) + bo


if __name__ == "__main__":
    key = jax.random.PRNGKey(0)

    # --- 1) small f32 config (tight check; unrolled layers, single tile) ----
    batch, state_size, action_size = 2, 8, 4
    hidden_size, output_size, n_layers = 32, 4, 2
    kx, ka, kp = jax.random.split(key, 3)
    x = jax.random.normal(kx, (batch, state_size), jnp.float32)
    ac = jax.random.normal(ka, (batch, action_size), jnp.float32)
    params = init_params(kp, state_size, action_size, hidden_size,
                         output_size, n_layers)
    pparams, out_size = prepare_params(params, compute_dtype=jnp.float32)
    out = jax.block_until_ready(qnet_forward(x, ac, pparams, n_layers, out_size))
    ref = qnet_reference(x, ac, params, n_layers)
    assert out.shape == (batch, output_size)
    assert jnp.allclose(out, ref, atol=1e-4, rtol=1e-4), (out, ref)

    # --- 2) deeper/wider f32 config, large batch: exercises the fori_loop
    #        layer path, multi-tile batch grid and batch/feature padding ------
    batch2, hidden2, out2, layers2 = 1029, 256, 3, 6
    kx2, ka2, kp2 = jax.random.split(jax.random.PRNGKey(1), 3)
    x2 = jax.random.normal(kx2, (batch2, state_size), jnp.float32)
    ac2 = jax.random.normal(ka2, (batch2, action_size), jnp.float32)
    params2 = init_params(kp2, state_size, action_size, hidden2, out2, layers2)
    pparams2, out_size2 = prepare_params(params2, compute_dtype=jnp.float32)
    o2 = jax.block_until_ready(qnet_forward(x2, ac2, pparams2, layers2, out_size2))
    r2 = qnet_reference(x2, ac2, params2, layers2)
    assert o2.shape == (batch2, out2)
    assert jnp.allclose(o2, r2, atol=1e-3, rtol=1e-3)

    # --- 3) same config with bf16 weights/activations: native MXU bf16 path,
    #        bf16 epilogue + bf16 output writeback (accumulation stays f32) ---
    pparams2_bf16, _ = prepare_params(params2, compute_dtype=jnp.bfloat16)
    o3 = jax.block_until_ready(
        qnet_forward(x2, ac2, pparams2_bf16, layers2, out_size2))
    assert o3.shape == (batch2, out2)
    rel_err = jnp.max(jnp.abs(o3 - r2)) / (jnp.max(jnp.abs(r2)) + 1e-6)
    assert rel_err < 0.1, rel_err

    print("KERNEL_OK")
</pallas_src>

<mosaic_0001>
module attributes {stable_mosaic.version = 11 : i64} {
  func.func @qnet_kernel(%arg0: i32, %arg1: memref<8x12xf32, #tpu.memory_space<vmem>>, %arg2: memref<12x128xf32, #tpu.memory_space<vmem>>, %arg3: memref<1x128xf32, #tpu.memory_space<vmem>>, %arg4: memref<2x128x128xf32, #tpu.memory_space<vmem>>, %arg5: memref<2x1x128xf32, #tpu.memory_space<vmem>>, %arg6: memref<128x128xf32, #tpu.memory_space<vmem>>, %arg7: memref<1x128xf32, #tpu.memory_space<vmem>>, %arg8: memref<8x128xf32, #tpu.memory_space<vmem>>) attributes {dimension_semantics = [#tpu.dimension_semantics<parallel>], iteration_bounds = array<i64: 1>, scalar_prefetch = 0 : i64, scratch_operands = 0 : i64, tpu.core_type = #tpu.core_type<tc>, window_params = [{transform_indices = @transform_0, window_bounds = array<i64: 8, 12>}, {pipeline_mode = #tpu.pipeline_mode<synchronous>, transform_indices = @transform_1, window_bounds = array<i64: 12, 128>}, {pipeline_mode = #tpu.pipeline_mode<synchronous>, transform_indices = @transform_2, window_bounds = array<i64: 1, 128>}, {pipeline_mode = #tpu.pipeline_mode<synchronous>, transform_indices = @transform_3, window_bounds = array<i64: 2, 128, 128>}, {pipeline_mode = #tpu.pipeline_mode<synchronous>, transform_indices = @transform_4, window_bounds = array<i64: 2, 1, 128>}, {pipeline_mode = #tpu.pipeline_mode<synchronous>, transform_indices = @transform_5, window_bounds = array<i64: 128, 128>}, {pipeline_mode = #tpu.pipeline_mode<synchronous>, transform_indices = @transform_6, window_bounds = array<i64: 1, 128>}, {transform_indices = @transform_7, window_bounds = array<i64: 8, 128>}]} {
    %c0 = arith.constant 0 : index
    %c0_0 = arith.constant 0 : index
    %0 = vector.load %arg1[%c0, %c0_0] : memref<8x12xf32, #tpu.memory_space<vmem>>, vector<8x12xf32>
    %c0_1 = arith.constant 0 : index
    %c0_2 = arith.constant 0 : index
    %1 = vector.load %arg2[%c0_1, %c0_2] : memref<12x128xf32, #tpu.memory_space<vmem>>, vector<12x128xf32>
    %cst = arith.constant dense<0.000000e+00> : vector<8x128xf32>
    %2 = tpu.matmul %0, %1, %cst {dimension_numbers = #tpu.dot_dimension_numbers<[1], [0], [0], [1], [0, 0, 1, 1], [], []>} : vector<8x12xf32>, vector<12x128xf32>, vector<8x128xf32> -> vector<8x128xf32>
    %c0_3 = arith.constant 0 : index
    %c0_4 = arith.constant 0 : index
    %3 = vector.load %arg3[%c0_3, %c0_4] : memref<1x128xf32, #tpu.memory_space<vmem>>, vector<1x128xf32>
    %4 = vector.broadcast %3 : vector<1x128xf32> to vector<8x128xf32>
    %5 = arith.addf %2, %4 : vector<8x128xf32>
    %cst_5 = arith.constant 0.000000e+00 : f32
    %6 = vector.broadcast %cst_5 : f32 to vector<8x128xf32>
    %7 = arith.maximumf %5, %6 : vector<8x128xf32>
    %c0_6 = arith.constant 0 : index
    %c0_7 = arith.constant 0 : index
    %c0_8 = arith.constant 0 : index
    %8 = vector.load %arg4[%c0_6, %c0_7, %c0_8] : memref<2x128x128xf32, #tpu.memory_space<vmem>>, vector<1x128x128xf32>
    %9 = vector.shape_cast %8 : vector<1x128x128xf32> to vector<128x128xf32>
    %cst_9 = arith.constant dense<0.000000e+00> : vector<8x128xf32>
    %10 = tpu.matmul %7, %9, %cst_9 {dimension_numbers = #tpu.dot_dimension_numbers<[1], [0], [0], [1], [0, 0, 1, 1], [], []>} : vector<8x128xf32>, vector<128x128xf32>, vector<8x128xf32> -> vector<8x128xf32>
    %c0_10 = arith.constant 0 : index
    %c0_11 = arith.constant 0 : index
    %c0_12 = arith.constant 0 : index
    %11 = vector.load %arg5[%c0_10, %c0_11, %c0_12] : memref<2x1x128xf32, #tpu.memory_space<vmem>>, vector<1x1x128xf32>
    %12 = vector.shape_cast %11 : vector<1x1x128xf32> to vector<1x128xf32>
    %13 = vector.broadcast %12 : vector<1x128xf32> to vector<8x128xf32>
    %14 = arith.addf %10, %13 : vector<8x128xf32>
    %cst_13 = arith.constant 0.000000e+00 : f32
    %15 = vector.broadcast %cst_13 : f32 to vector<8x128xf32>
    %16 = arith.maximumf %14, %15 : vector<8x128xf32>
    %c1 = arith.constant 1 : index
    %c0_14 = arith.constant 0 : index
    %c0_15 = arith.constant 0 : index
    %17 = vector.load %arg4[%c1, %c0_14, %c0_15] : memref<2x128x128xf32, #tpu.memory_space<vmem>>, vector<1x128x128xf32>
    %18 = vector.shape_cast %17 : vector<1x128x128xf32> to vector<128x128xf32>
    %cst_16 = arith.constant dense<0.000000e+00> : vector<8x128xf32>
    %19 = tpu.matmul %16, %18, %cst_16 {dimension_numbers = #tpu.dot_dimension_numbers<[1], [0], [0], [1], [0, 0, 1, 1], [], []>} : vector<8x128xf32>, vector<128x128xf32>, vector<8x128xf32> -> vector<8x128xf32>
    %c1_17 = arith.constant 1 : index
    %c0_18 = arith.constant 0 : index
    %c0_19 = arith.constant 0 : index
    %20 = vector.load %arg5[%c1_17, %c0_18, %c0_19] : memref<2x1x128xf32, #tpu.memory_space<vmem>>, vector<1x1x128xf32>
    %21 = vector.shape_cast %20 : vector<1x1x128xf32> to vector<1x128xf32>
    %22 = vector.broadcast %21 : vector<1x128xf32> to vector<8x128xf32>
    %23 = arith.addf %19, %22 : vector<8x128xf32>
    %cst_20 = arith.constant 0.000000e+00 : f32
    %24 = vector.broadcast %cst_20 : f32 to vector<8x128xf32>
    %25 = arith.maximumf %23, %24 : vector<8x128xf32>
    %c0_21 = arith.constant 0 : index
    %c0_22 = arith.constant 0 : index
    %26 = vector.load %arg6[%c0_21, %c0_22] : memref<128x128xf32, #tpu.memory_space<vmem>>, vector<128x128xf32>
    %cst_23 = arith.constant dense<0.000000e+00> : vector<8x128xf32>
    %27 = tpu.matmul %25, %26, %cst_23 {dimension_numbers = #tpu.dot_dimension_numbers<[1], [0], [0], [1], [0, 0, 1, 1], [], []>} : vector<8x128xf32>, vector<128x128xf32>, vector<8x128xf32> -> vector<8x128xf32>
    %c0_24 = arith.constant 0 : index
    %c0_25 = arith.constant 0 : index
    %28 = vector.load %arg7[%c0_24, %c0_25] : memref<1x128xf32, #tpu.memory_space<vmem>>, vector<1x128xf32>
    %29 = vector.broadcast %28 : vector<1x128xf32> to vector<8x128xf32>
    %30 = arith.addf %27, %29 : vector<8x128xf32>
    %c0_26 = arith.constant 0 : index
    %c0_27 = arith.constant 0 : index
    %31 = vector.load %arg8[%c0_26, %c0_27] : memref<8x128xf32, #tpu.memory_space<vmem>>, vector<8x128xf32>
    tpu.vector_store %arg8[%c0_26, %c0_27], %30 {strides = array<i32>} : memref<8x128xf32, #tpu.memory_space<vmem>>, vector<8x128xf32>,
    return
  }
  func.func @transform_0(%arg0: i32) -> (i32, i32) {
    %c0_i32 = arith.constant 0 : i32
    %c0_i32_0 = arith.constant 0 : i32
    return %arg0, %c0_i32 : i32, i32
  }
  func.func @transform_1(%arg0: i32) -> (i32, i32) {
    %c0_i32 = arith.constant 0 : i32
    %c0_i32_0 = arith.constant 0 : i32
    %c0_i32_1 = arith.constant 0 : i32
    return %c0_i32, %c0_i32_0 : i32, i32
  }
  func.func @transform_2(%arg0: i32) -> (i32, i32) {
    %c0_i32 = arith.constant 0 : i32
    %c0_i32_0 = arith.constant 0 : i32
    %c0_i32_1 = arith.constant 0 : i32
    return %c0_i32, %c0_i32_0 : i32, i32
  }
  func.func @transform_3(%arg0: i32) -> (i32, i32, i32) {
    %c0_i32 = arith.constant 0 : i32
    %c0_i32_0 = arith.constant 0 : i32
    %c0_i32_1 = arith.constant 0 : i32
    %c0_i32_2 = arith.constant 0 : i32
    return %c0_i32, %c0_i32_0, %c0_i32_1 : i32, i32, i32
  }
  func.func @transform_4(%arg0: i32) -> (i32, i32, i32) {
    %c0_i32 = arith.constant 0 : i32
    %c0_i32_0 = arith.constant 0 : i32
    %c0_i32_1 = arith.constant 0 : i32
    %c0_i32_2 = arith.constant 0 : i32
    return %c0_i32, %c0_i32_0, %c0_i32_1 : i32, i32, i32
  }
  func.func @transform_5(%arg0: i32) -> (i32, i32) {
    %c0_i32 = arith.constant 0 : i32
    %c0_i32_0 = arith.constant 0 : i32
    %c0_i32_1 = arith.constant 0 : i32
    return %c0_i32, %c0_i32_0 : i32, i32
  }
  func.func @transform_6(%arg0: i32) -> (i32, i32) {
    %c0_i32 = arith.constant 0 : i32
    %c0_i32_0 = arith.constant 0 : i32
    %c0_i32_1 = arith.constant 0 : i32
    return %c0_i32, %c0_i32_0 : i32, i32
  }
  func.func @transform_7(%arg0: i32) -> (i32, i32) {
    %c0_i32 = arith.constant 0 : i32
    %c0_i32_0 = arith.constant 0 : i32
    return %arg0, %c0_i32 : i32, i32
  }
}

module attributes {stable_mosaic.version = 11 : i64} {
  func.func @qnet_kernel(%arg0: i32, %arg1: memref<8x12xf32, #tpu.memory_space<vmem>>, %arg2: memref<12x128xf32, #tpu.memory_space<vmem>>, %arg3: memref<1x128xf32, #tpu.memory_space<vmem>>, %arg4: memref<2x128x128xf32, #tpu.memory_space<vmem>>, %arg5: memref<2x1x128xf32, #tpu.memory_space<vmem>>, %arg6: memref<128x128xf32, #tpu.memory_space<vmem>>, %arg7: memref<1x128xf32, #tpu.memory_space<vmem>>, %arg8: memref<8x128xf32, #tpu.memory_space<vmem>>) attributes {dimension_semantics = [#tpu.dimension_semantics<parallel>], iteration_bounds = array<i64: 1>, scalar_prefetch = 0 : i64, scratch_operands = 0 : i64, tpu.core_type = #tpu.core_type<tc>, window_params = [{transform_indices = @transform_0, window_bounds = array<i64: 8, 12>}, {pipeline_mode = #tpu.pipeline_mode<synchronous>, transform_indices = @transform_1, window_bounds = array<i64: 12, 128>}, {pipeline_mode = #tpu.pipeline_mode<synchronous>, transform_indices = @transform_2, window_bounds = array<i64: 1, 128>}, {pipeline_mode = #tpu.pipeline_mode<synchronous>, transform_indices = @transform_3, window_bounds = array<i64: 2, 128, 128>}, {pipeline_mode = #tpu.pipeline_mode<synchronous>, transform_indices = @transform_4, window_bounds = array<i64: 2, 1, 128>}, {pipeline_mode = #tpu.pipeline_mode<synchronous>, transform_indices = @transform_5, window_bounds = array<i64: 128, 128>}, {pipeline_mode = #tpu.pipeline_mode<synchronous>, transform_indices = @transform_6, window_bounds = array<i64: 1, 128>}, {transform_indices = @transform_7, window_bounds = array<i64: 8, 128>}]} {
    %c0 = arith.constant 0 : index
    %c0_0 = arith.constant 0 : index
    %0 = vector.load %arg1[%c0, %c0_0] : memref<8x12xf32, #tpu.memory_space<vmem>>, vector<8x12xf32>
    %c0_1 = arith.constant 0 : index
    %c0_2 = arith.constant 0 : index
    %1 = vector.load %arg2[%c0_1, %c0_2] : memref<12x128xf32, #tpu.memory_space<vmem>>, vector<12x128xf32>
    %cst = arith.constant dense<0.000000e+00> : vector<8x128xf32>
    %2 = tpu.matmul %0, %1, %cst {dimension_numbers = #tpu.dot_dimension_numbers<[1], [0], [0], [1], [0, 0, 1, 1], [], []>} : vector<8x12xf32>, vector<12x128xf32>, vector<8x128xf32> -> vector<8x128xf32>
    %c0_3 = arith.constant 0 : index
    %c0_4 = arith.constant 0 : index
    %3 = vector.load %arg3[%c0_3, %c0_4] : memref<1x128xf32, #tpu.memory_space<vmem>>, vector<1x128xf32>
    %4 = vector.broadcast %3 : vector<1x128xf32> to vector<8x128xf32>
    %5 = arith.addf %2, %4 : vector<8x128xf32>
    %cst_5 = arith.constant 0.000000e+00 : f32
    %6 = vector.broadcast %cst_5 : f32 to vector<8x128xf32>
    %7 = arith.maximumf %5, %6 : vector<8x128xf32>
    %c0_6 = arith.constant 0 : index
    %c0_7 = arith.constant 0 : index
    %c0_8 = arith.constant 0 : index
    %8 = vector.load %arg4[%c0_6, %c0_7, %c0_8] : memref<2x128x128xf32, #tpu.memory_space<vmem>>, vector<1x128x128xf32>
    %9 = vector.shape_cast %8 : vector<1x128x128xf32> to vector<128x128xf32>
    %cst_9 = arith.constant dense<0.000000e+00> : vector<8x128xf32>
    %10 = tpu.matmul %7, %9, %cst_9 {dimension_numbers = #tpu.dot_dimension_numbers<[1], [0], [0], [1], [0, 0, 1, 1], [], []>} : vector<8x128xf32>, vector<128x128xf32>, vector<8x128xf32> -> vector<8x128xf32>
    %c0_10 = arith.constant 0 : index
    %c0_11 = arith.constant 0 : index
    %c0_12 = arith.constant 0 : index
    %11 = vector.load %arg5[%c0_10, %c0_11, %c0_12] : memref<2x1x128xf32, #tpu.memory_space<vmem>>, vector<1x1x128xf32>
    %12 = vector.shape_cast %11 : vector<1x1x128xf32> to vector<1x128xf32>
    %13 = vector.broadcast %12 : vector<1x128xf32> to vector<8x128xf32>
    %14 = arith.addf %10, %13 : vector<8x128xf32>
    %cst_13 = arith.constant 0.000000e+00 : f32
    %15 = vector.broadcast %cst_13 : f32 to vector<8x128xf32>
    %16 = arith.maximumf %14, %15 : vector<8x128xf32>
    %c1 = arith.constant 1 : index
    %c0_14 = arith.constant 0 : index
    %c0_15 = arith.constant 0 : index
    %17 = vector.load %arg4[%c1, %c0_14, %c0_15] : memref<2x128x128xf32, #tpu.memory_space<vmem>>, vector<1x128x128xf32>
    %18 = vector.shape_cast %17 : vector<1x128x128xf32> to vector<128x128xf32>
    %cst_16 = arith.constant dense<0.000000e+00> : vector<8x128xf32>
    %19 = tpu.matmul %16, %18, %cst_16 {dimension_numbers = #tpu.dot_dimension_numbers<[1], [0], [0], [1], [0, 0, 1, 1], [], []>} : vector<8x128xf32>, vector<128x128xf32>, vector<8x128xf32> -> vector<8x128xf32>
    %c1_17 = arith.constant 1 : index
    %c0_18 = arith.constant 0 : index
    %c0_19 = arith.constant 0 : index
    %20 = vector.load %arg5[%c1_17, %c0_18, %c0_19] : memref<2x1x128xf32, #tpu.memory_space<vmem>>, vector<1x1x128xf32>
    %21 = vector.shape_cast %20 : vector<1x1x128xf32> to vector<1x128xf32>
    %22 = vector.broadcast %21 : vector<1x128xf32> to vector<8x128xf32>
    %23 = arith.addf %19, %22 : vector<8x128xf32>
    %cst_20 = arith.constant 0.000000e+00 : f32
    %24 = vector.broadcast %cst_20 : f32 to vector<8x128xf32>
    %25 = arith.maximumf %23, %24 : vector<8x128xf32>
    %c0_21 = arith.constant 0 : index
    %c0_22 = arith.constant 0 : index
    %26 = vector.load %arg6[%c0_21, %c0_22] : memref<128x128xf32, #tpu.memory_space<vmem>>, vector<128x128xf32>
    %cst_23 = arith.constant dense<0.000000e+00> : vector<8x128xf32>
    %27 = tpu.matmul %25, %26, %cst_23 {dimension_numbers = #tpu.dot_dimension_numbers<[1], [0], [0], [1], [0, 0, 1, 1], [], []>} : vector<8x128xf32>, vector<128x128xf32>, vector<8x128xf32> -> vector<8x128xf32>
    %c0_24 = arith.constant 0 : index
    %c0_25 = arith.constant 0 : index
    %28 = vector.load %arg7[%c0_24, %c0_25] : memref<1x128xf32, #tpu.memory_space<vmem>>, vector<1x128xf32>
    %29 = vector.broadcast %28 : vector<1x128xf32> to vector<8x128xf32>
    %30 = arith.addf %27, %29 : vector<8x128xf32>
    %c0_26 = arith.constant 0 : index
    %c0_27 = arith.constant 0 : index
    %31 = vector.load %arg8[%c0_26, %c0_27] : memref<8x128xf32, #tpu.memory_space<vmem>>, vector<8x128xf32>
    tpu.vector_store %arg8[%c0_26, %c0_27], %30 {strides = array<i32>} : memref<8x128xf32, #tpu.memory_space<vmem>>, vector<8x128xf32>,
    return
  }
  func.func @transform_0(%arg0: i32) -> (i32, i32) {
    %c0_i32 = arith.constant 0 : i32
    %c0_i32_0 = arith.constant 0 : i32
    return %arg0, %c0_i32 : i32, i32
  }
  func.func @transform_1(%arg0: i32) -> (i32, i32) {
    %c0_i32 = arith.constant 0 : i32
    %c0_i32_0 = arith.constant 0 : i32
    %c0_i32_1 = arith.constant 0 : i32
    return %c0_i32, %c0_i32_0 : i32, i32
  }
  func.func @transform_2(%arg0: i32) -> (i32, i32) {
    %c0_i32 = arith.constant 0 : i32
    %c0_i32_0 = arith.constant 0 : i32
    %c0_i32_1 = arith.constant 0 : i32
    return %c0_i32, %c0_i32_0 : i32, i32
  }
  func.func @transform_3(%arg0: i32) -> (i32, i32, i32) {
    %c0_i32 = arith.constant 0 : i32
    %c0_i32_0 = arith.constant 0 : i32
    %c0_i32_1 = arith.constant 0 : i32
    %c0_i32_2 = arith.constant 0 : i32
    return %c0_i32, %c0_i32_0, %c0_i32_1 : i32, i32, i32
  }
  func.func @transform_4(%arg0: i32) -> (i32, i32, i32) {
    %c0_i32 = arith.constant 0 : i32
    %c0_i32_0 = arith.constant 0 : i32
    %c0_i32_1 = arith.constant 0 : i32
    %c0_i32_2 = arith.constant 0 : i32
    return %c0_i32, %c0_i32_0, %c0_i32_1 : i32, i32, i32
  }
  func.func @transform_5(%arg0: i32) -> (i32, i32) {
    %c0_i32 = arith.constant 0 : i32
    %c0_i32_0 = arith.constant 0 : i32
    %c0_i32_1 = arith.constant 0 : i32
    return %c0_i32, %c0_i32_0 : i32, i32
  }
  func.func @transform_6(%arg0: i32) -> (i32, i32) {
    %c0_i32 = arith.constant 0 : i32
    %c0_i32_0 = arith.constant 0 : i32
    %c0_i32_1 = arith.constant 0 : i32
    return %c0_i32, %c0_i32_0 : i32, i32
  }
  func.func @transform_7(%arg0: i32) -> (i32, i32) {
    %c0_i32 = arith.constant 0 : i32
    %c0_i32_0 = arith.constant 0 : i32
    return %arg0, %c0_i32 : i32, i32
  }
}

</mosaic_0001>

<llo_original>
// kernel: _qnet_forward_impl.1
$region0: #{_qnet_forward_impl.1}
  #allocation0 [shape = 'u32[]', space=smem, size = 0x4, offset = 0x4, fixed_abs, tag = 'smem constant byte address 0x4 - core index']
  #allocation1 [shape = 'u32[144,128]{1,0:T(1,128)}', space=vmem, size = 0x12000, scoped, tag = 'internal scratch']
  %s0 = inlined_call_operand.vmem [shape: f32[8,12], index: 0, kind: input, shape index: {}]
  %s1 = inlined_call_operand.hbm [shape: f32[12,128], index: 1, kind: input, shape index: {}]
  %s2 = inlined_call_operand.vmem [shape: f32[1,128], index: 2, kind: input, shape index: {}]
  %s3 = inlined_call_operand.hbm [shape: f32[2,128,128], index: 3, kind: input, shape index: {}]
  %s4 = inlined_call_operand.vmem [shape: f32[2,1,128], index: 4, kind: input, shape index: {}]
  %s5 = inlined_call_operand.hbm [shape: f32[128,128], index: 5, kind: input, shape index: {}]
  %s6 = inlined_call_operand.vmem [shape: f32[1,128], index: 6, kind: input, shape index: {}]
  %s7 = inlined_call_operand.vmem [shape: f32[8,128], index: 7, kind: output, shape index: {}]
  %s8 = sld [smem:[#allocation0]]
  $region50: #{_qnet_forward_impl.1} parent=0
    _
  %s10 = ssub.s32 1, %s8
  %s11 = scalar_select 0, %s10, %s8
  $region1: #{_qnet_forward_impl.1} parent=0
    #allocation2 [shape = 'u8[8192]{0}', space=vmem, size = 0x2000, scoped, tag = 'input window, operand 1, single buffered']
    #allocation3 [shape = 's32[1]{0}', space=sflag, size = 0x4, scoped, tag = 'scoped memory for _qnet_forward_impl.1']
    #allocation4 [shape = 'u8[131072]{0}', space=vmem, size = 0x20000, scoped, tag = 'input window, operand 3, single buffered']
    #allocation5 [shape = 's32[1]{0}', space=sflag, size = 0x4, scoped, tag = 'scoped memory for _qnet_forward_impl.1']
    #allocation6 [shape = 'u8[65536]{0}', space=vmem, size = 0x10000, scoped, tag = 'input window, operand 5, single buffered']
    %12 = vsyncpa [#allocation3], 0
    %13 = vsyncpa [#allocation5], 0
    // Predicated region
    $region2: #{_qnet_forward_impl.1} parent=1 // pred_check
      _
    $region3: #{_qnet_forward_impl.1} parent=1 // pred_check_branch
      %15 = sbr.rel (0) target = $region5
    $region4: #{_qnet_forward_impl.1} parent=1 // pred_region
      _
    $region5: #{_qnet_forward_impl.1} parent=1 // pred_fallthru
      _
    // Predicated region
    $region6: #{_qnet_forward_impl.1} parent=1 // pred_check
      _
    $region7: #{_qnet_forward_impl.1} parent=1 // pred_check_branch
      %17 = sbr.rel (0) target = $region9
    $region8: #{_qnet_forward_impl.1} parent=1 // pred_region
      %s19 = ssub.s32 256, 256
      %20 = vsyncadd [#allocation3], %s19
      %s21 = sshll.u32 [#allocation2], 4
      %s22 = int_to_ptr.vmem [resolvable:$true] %s21
      %27 = dma.hbm_to_vmem [thread:$0]  %s1, 256, %s22, [#allocation3], 128, 128, 8
    $region9: #{_qnet_forward_impl.1} parent=1 // pred_fallthru
      _
    // Predicated region
    $region10: #{_qnet_forward_impl.1} parent=1 // pred_check
      _
    $region11: #{_qnet_forward_impl.1} parent=1 // pred_check_branch
      %29 = sbr.rel (0) target = $region13
    $region12: #{_qnet_forward_impl.1} parent=1 // pred_region
      _
    $region13: #{_qnet_forward_impl.1} parent=1 // pred_fallthru
      _
    // Predicated region
    $region14: #{_qnet_forward_impl.1} parent=1 // pred_check
      _
    $region15: #{_qnet_forward_impl.1} parent=1 // pred_check_branch
      %31 = sbr.rel (0) target = $region17
    $region16: #{_qnet_forward_impl.1} parent=1 // pred_region
      %s33 = ssub.s32 4096, 4096
      %34 = vsyncadd [#allocation5], %s33
      %s35 = sshll.u32 [#allocation4], 4
      %s36 = int_to_ptr.vmem [resolvable:$true] %s35
      %41 = dma.hbm_to_vmem [thread:$0]  %s3, 4096, %s36, [#allocation5], 128, 128, 8
    $region17: #{_qnet_forward_impl.1} parent=1 // pred_fallthru
      _
    // Predicated region
    $region18: #{_qnet_forward_impl.1} parent=1 // pred_check
      _
    $region19: #{_qnet_forward_impl.1} parent=1 // pred_check_branch
      %43 = sbr.rel (0) target = $region21
    $region20: #{_qnet_forward_impl.1} parent=1 // pred_region
      _
    $region21: #{_qnet_forward_impl.1} parent=1 // pred_fallthru
      _
    // Predicated region
    $region22: #{_qnet_forward_impl.1} parent=1 // pred_check
      _
    $region23: #{_qnet_forward_impl.1} parent=1 // pred_check_branch
      %45 = sbr.rel (0) target = $region25
    $region24: #{_qnet_forward_impl.1} parent=1 // pred_region
      %s47 = ssub.s32 2048, 2048
      %48 = vsyncadd [#allocation5], %s47
      %s49 = sshll.u32 [#allocation6], 4
      %s50 = int_to_ptr.vmem [resolvable:$true] %s49
      %55 = dma.hbm_to_vmem [thread:$0]  %s5, 2048, %s50, [#allocation5], 128, 128, 8
    $region25: #{_qnet_forward_impl.1} parent=1 // pred_fallthru
      _
    // Predicated region
    $region26: #{_qnet_forward_impl.1} parent=1 // pred_check
      _
    $region27: #{_qnet_forward_impl.1} parent=1 // pred_check_branch
      %57 = sbr.rel (0) target = $region29
    $region28: #{_qnet_forward_impl.1} parent=1 // pred_region
      _
    $region29: #{_qnet_forward_impl.1} parent=1 // pred_fallthru
      _
    // Predicated region
    $region30: #{_qnet_forward_impl.1} parent=1 // pred_check
      _
    $region31: #{_qnet_forward_impl.1} parent=1 // pred_check_branch
      %59 = sbr.rel (0) target = $region33
    $region32: #{_qnet_forward_impl.1} parent=1 // pred_region
      %60 = dma.done [#allocation3], 256
    $region33: #{_qnet_forward_impl.1} parent=1 // pred_fallthru
      _
    // Predicated region
    $region34: #{_qnet_forward_impl.1} parent=1 // pred_check
      _
    $region35: #{_qnet_forward_impl.1} parent=1 // pred_check_branch
      %62 = sbr.rel (0) target = $region37
    $region36: #{_qnet_forward_impl.1} parent=1 // pred_region
      %63 = dma.done [#allocation5], 4096
    $region37: #{_qnet_forward_impl.1} parent=1 // pred_fallthru
      _
    // Predicated region
    $region38: #{_qnet_forward_impl.1} parent=1 // pred_check
      _
    $region39: #{_qnet_forward_impl.1} parent=1 // pred_check_branch
      %65 = sbr.rel (0) target = $region41
    $region40: #{_qnet_forward_impl.1} parent=1 // pred_region
      %66 = dma.done [#allocation5], 2048
    $region41: #{_qnet_forward_impl.1} parent=1 // pred_fallthru
      _
    %v67 = vld [vmem:[%s0] sm:$0xff]
    %v68 = vld [vmem:[#allocation2] sm:$0xff]
    %v69 = vld [vmem:[#allocation2 + $0x8] sm:$0xf]
    %v70 = vld [vmem:[%s2] sm:$0x1]
    %v72 = vlaneseq
    %v73 = vshrl.u32 %v72, 7
    %v74 = vsub.s32 0, %v73
    %v75 = vrot.slane %v70, %v74
    %vm77 = vcmask 97280
    %v79 = vsel %vm77, %v67, 0
    %vm81 = vcmask 1043456
    %v83 = vsel %vm81, %v69, 0
    %85 = vmatprep.subr.mxu0 0.0
    %86 = vmatpush1.msra.mxu0 0.0
    %87 = vmatprep.subr.mxu0 0.0
    %88 = vmatpush1.msra.mxu0 0.0
    %89 = vmatprep.subr.mxu0 0.0
    %90 = vmatpush1.msra.mxu0 0.0
    %91 = vmatprep.subr.mxu0 0.0
    %92 = vmatpush1.msra.mxu0 0.0
    %93 = vmatprep.subr.mxu0 0.0
    %94 = vmatpush1.msra.mxu0 0.0
    %95 = vmatprep.subr.mxu0 0.0
    %96 = vmatpush1.msra.mxu0 0.0
    %97 = vmatprep.subr.mxu0 0.0
    %98 = vmatpush1.msra.mxu0 0.0
    %99 = vmatprep.subr.mxu0 0.0
    %100 = vmatpush1.msra.mxu0 0.0
    %101 = vmatprep.subr.mxu0 0.0
    %102 = vmatpush1.msra.mxu0 0.0
    %103 = vmatprep.subr.mxu0 0.0
    %104 = vmatpush1.msra.mxu0 0.0
    %105 = vmatprep.subr.mxu0 0.0
    %106 = vmatpush1.msra.mxu0 0.0
    %107 = vmatprep.subr.mxu0 0.0
    %108 = vmatpush1.msra.mxu0 0.0
    %109 = vmatprep.subr.mxu0 0.0
    %110 = vmatpush1.msra.mxu0 0.0
    %111 = vmatprep.subr.mxu0 0.0
    %112 = vmatpush1.msra.mxu0 0.0
    %113 = vmatprep.subr.mxu0 0.0
    %114 = vmatpush1.msra.mxu0 %v83
    %115 = vmatprep.subr.mxu0 0.0
    %116 = vmatpush1.msra.mxu0 %v68
    %117 = vmatprep.subr.mxu0 0.0
    %118 = vmatpush2.msra.mxu0 0.0
    %119 = vmatprep.subr.mxu0 0.0
    %120 = vmatpush2.msra.mxu0 0.0
    %121 = vmatprep.subr.mxu0 0.0
    %122 = vmatpush2.msra.mxu0 0.0
    %123 = vmatprep.subr.mxu0 0.0
    %124 = vmatpush2.msra.mxu0 0.0
    %125 = vmatprep.subr.mxu0 0.0
    %126 = vmatpush2.msra.mxu0 0.0
    %127 = vmatprep.subr.mxu0 0.0
    %128 = vmatpush2.msra.mxu0 0.0
    %129 = vmatprep.subr.mxu0 0.0
    %130 = vmatpush2.msra.mxu0 0.0
    %131 = vmatprep.subr.mxu0 0.0
    %132 = vmatpush2.msra.mxu0 0.0
    %133 = vmatprep.subr.mxu0 0.0
    %134 = vmatpush2.msra.mxu0 0.0
    %135 = vmatprep.subr.mxu0 0.0
    %136 = vmatpush2.msra.mxu0 0.0
    %137 = vmatprep.subr.mxu0 0.0
    %138 = vmatpush2.msra.mxu0 0.0
    %139 = vmatprep.subr.mxu0 0.0
    %140 = vmatpush2.msra.mxu0 0.0
    %141 = vmatprep.subr.mxu0 0.0
    %142 = vmatpush2.msra.mxu0 0.0
    %143 = vmatprep.subr.mxu0 0.0
    %144 = vmatpush2.msra.mxu0 0.0
    %145 = vmatprep.subr.mxu0 0.0
    %146 = vmatpush2.msra.mxu0 0.0
    %147 = vmatprep.subr.mxu0 0.0
    %148 = vmatpush2.msra.mxu0 0.0
    %149 = vmatprep.mubr.f32.mxu0 0.0
    %150 = vmatmul.mubr.f32.gmra.mxu0 %v79
    %v151 = vpop.f32.mrf.mxu0
    %v152 = vadd.f32 %v75, %v151
    %v153 = vpop.f32.mrf.mxu0
    %154 = vdwg.mxu0
    %v155 = vmax.f32 %v152, 0.0
    %v156 = vld [vmem:[#allocation4] sm:$0xff]
    %v157 = vld [vmem:[#allocation4 + $0x8] sm:$0xff]
    %v158 = vld [vmem:[#allocation4 + $0x10] sm:$0xff]
    %v159 = vld [vmem:[#allocation4 + $0x18] sm:$0xff]
    %v160 = vld [vmem:[#allocation4 + $0x20] sm:$0xff]
    %v161 = vld [vmem:[#allocation4 + $0x28] sm:$0xff]
    %v162 = vld [vmem:[#allocation4 + $0x30] sm:$0xff]
    %v163 = vld [vmem:[#allocation4 + $0x38] sm:$0xff]
    %v164 = vld [vmem:[#allocation4 + $0x40] sm:$0xff]
    %v165 = vld [vmem:[#allocation4 + $0x48] sm:$0xff]
    %v166 = vld [vmem:[#allocation4 + $0x50] sm:$0xff]
    %v167 = vld [vmem:[#allocation4 + $0x58] sm:$0xff]
    %v168 = vld [vmem:[#allocation4 + $0x60] sm:$0xff]
    %v169 = vld [vmem:[#allocation4 + $0x68] sm:$0xff]
    %v170 = vld [vmem:[#allocation4 + $0x70] sm:$0xff]
    %v171 = vld [vmem:[#allocation4 + $0x78] sm:$0xff]
    %v172 = vld [vmem:[%s4] sm:$0x1]
    %v174 = vlaneseq
    %v175 = vshrl.u32 %v174, 7
    %v176 = vsub.s32 0, %v175
    %v177 = vrot.slane %v172, %v176
    %179 = vmatprep.subr.mxu0 0.0
    %180 = vmatpush1.msra.mxu0 %v171
    %181 = vmatprep.subr.mxu0 0.0
    %182 = vmatpush1.msra.mxu0 %v170
    %183 = vmatprep.subr.mxu0 0.0
    %184 = vmatpush1.msra.mxu0 %v169
    %185 = vmatprep.subr.mxu0 0.0
    %186 = vmatpush1.msra.mxu0 %v168
    %187 = vmatprep.subr.mxu0 0.0
    %188 = vmatpush1.msra.mxu0 %v167
    %189 = vmatprep.subr.mxu0 0.0
    %190 = vmatpush1.msra.mxu0 %v166
    %191 = vmatprep.subr.mxu0 0.0
    %192 = vmatpush1.msra.mxu0 %v165
    %193 = vmatprep.subr.mxu0 0.0
    %194 = vmatpush1.msra.mxu0 %v164
    %195 = vmatprep.subr.mxu0 0.0
    %196 = vmatpush1.msra.mxu0 %v163
    %197 = vmatprep.subr.mxu0 0.0
    %198 = vmatpush1.msra.mxu0 %v162
    %199 = vmatprep.subr.mxu0 0.0
    %200 = vmatpush1.msra.mxu0 %v161
    %201 = vmatprep.subr.mxu0 0.0
    %202 = vmatpush1.msra.mxu0 %v160
    %203 = vmatprep.subr.mxu0 0.0
    %204 = vmatpush1.msra.mxu0 %v159
    %205 = vmatprep.subr.mxu0 0.0
    %206 = vmatpush1.msra.mxu0 %v158
    %207 = vmatprep.subr.mxu0 0.0
    %208 = vmatpush1.msra.mxu0 %v157
    %209 = vmatprep.subr.mxu0 0.0
    %210 = vmatpush1.msra.mxu0 %v156
    %211 = vmatprep.subr.mxu0 0.0
    %212 = vmatpush2.msra.mxu0 0.0
    %213 = vmatprep.subr.mxu0 0.0
    %214 = vmatpush2.msra.mxu0 0.0
    %215 = vmatprep.subr.mxu0 0.0
    %216 = vmatpush2.msra.mxu0 0.0
    %217 = vmatprep.subr.mxu0 0.0
    %218 = vmatpush2.msra.mxu0 0.0
    %219 = vmatprep.subr.mxu0 0.0
    %220 = vmatpush2.msra.mxu0 0.0
    %221 = vmatprep.subr.mxu0 0.0
    %222 = vmatpush2.msra.mxu0 0.0
    %223 = vmatprep.subr.mxu0 0.0
    %224 = vmatpush2.msra.mxu0 0.0
    %225 = vmatprep.subr.mxu0 0.0
    %226 = vmatpush2.msra.mxu0 0.0
    %227 = vmatprep.subr.mxu0 0.0
    %228 = vmatpush2.msra.mxu0 0.0
    %229 = vmatprep.subr.mxu0 0.0
    %230 = vmatpush2.msra.mxu0 0.0
    %231 = vmatprep.subr.mxu0 0.0
    %232 = vmatpush2.msra.mxu0 0.0
    %233 = vmatprep.subr.mxu0 0.0
    %234 = vmatpush2.msra.mxu0 0.0
    %235 = vmatprep.subr.mxu0 0.0
    %236 = vmatpush2.msra.mxu0 0.0
    %237 = vmatprep.subr.mxu0 0.0
    %238 = vmatpush2.msra.mxu0 0.0
    %239 = vmatprep.subr.mxu0 0.0
    %240 = vmatpush2.msra.mxu0 0.0
    %241 = vmatprep.subr.mxu0 0.0
    %242 = vmatpush2.msra.mxu0 0.0
    %243 = vmatprep.mubr.f32.mxu0 0.0
    %244 = vmatmul.mubr.f32.gmra.mxu0 %v155
    %v245 = vpop.f32.mrf.mxu0
    %v246 = vadd.f32 %v177, %v245
    %v247 = vpop.f32.mrf.mxu0
    %248 = vdwg.mxu0
    %v249 = vmax.f32 %v246, 0.0
    %s250 = scalar_lea.vmem [#allocation4], 128
    %v251 = vld [vmem:[%s250] sm:$0xff]
    %v252 = vld [vmem:[%s250 + $0x8] sm:$0xff]
    %v253 = vld [vmem:[%s250 + $0x10] sm:$0xff]
    %v254 = vld [vmem:[%s250 + $0x18] sm:$0xff]
    %v255 = vld [vmem:[%s250 + $0x20] sm:$0xff]
    %v256 = vld [vmem:[%s250 + $0x28] sm:$0xff]
    %v257 = vld [vmem:[%s250 + $0x30] sm:$0xff]
    %v258 = vld [vmem:[%s250 + $0x38] sm:$0xff]
    %v259 = vld [vmem:[%s250 + $0x40] sm:$0xff]
    %v260 = vld [vmem:[%s250 + $0x48] sm:$0xff]
    %v261 = vld [vmem:[%s250 + $0x50] sm:$0xff]
    %v262 = vld [vmem:[%s250 + $0x58] sm:$0xff]
    %v263 = vld [vmem:[%s250 + $0x60] sm:$0xff]
    %v264 = vld [vmem:[%s250 + $0x68] sm:$0xff]
    %v265 = vld [vmem:[%s250 + $0x70] sm:$0xff]
    %v266 = vld [vmem:[%s250 + $0x78] sm:$0xff]
    %s267 = scalar_lea.vmem %s4, 1
    %v268 = vld [vmem:[%s267] sm:$0x1]
    %v270 = vlaneseq
    %v271 = vshrl.u32 %v270, 7
    %v272 = vsub.s32 0, %v271
    %v273 = vrot.slane %v268, %v272
    %275 = vmatprep.subr.mxu0 0.0
    %276 = vmatpush1.msra.mxu0 %v266
    %277 = vmatprep.subr.mxu0 0.0
    %278 = vmatpush1.msra.mxu0 %v265
    %279 = vmatprep.subr.mxu0 0.0
    %280 = vmatpush1.msra.mxu0 %v264
    %281 = vmatprep.subr.mxu0 0.0
    %282 = vmatpush1.msra.mxu0 %v263
    %283 = vmatprep.subr.mxu0 0.0
    %284 = vmatpush1.msra.mxu0 %v262
    %285 = vmatprep.subr.mxu0 0.0
    %286 = vmatpush1.msra.mxu0 %v261
    %287 = vmatprep.subr.mxu0 0.0
    %288 = vmatpush1.msra.mxu0 %v260
    %289 = vmatprep.subr.mxu0 0.0
    %290 = vmatpush1.msra.mxu0 %v259
    %291 = vmatprep.subr.mxu0 0.0
    %292 = vmatpush1.msra.mxu0 %v258
    %293 = vmatprep.subr.mxu0 0.0
    %294 = vmatpush1.msra.mxu0 %v257
    %295 = vmatprep.subr.mxu0 0.0
    %296 = vmatpush1.msra.mxu0 %v256
    %297 = vmatprep.subr.mxu0 0.0
    %298 = vmatpush1.msra.mxu0 %v255
    %299 = vmatprep.subr.mxu0 0.0
    %300 = vmatpush1.msra.mxu0 %v254
    %301 = vmatprep.subr.mxu0 0.0
    %302 = vmatpush1.msra.mxu0 %v253
    %303 = vmatprep.subr.mxu0 0.0
    %304 = vmatpush1.msra.mxu0 %v252
    %305 = vmatprep.subr.mxu0 0.0
    %306 = vmatpush1.msra.mxu0 %v251
    %307 = vmatprep.subr.mxu0 0.0
    %308 = vmatpush2.msra.mxu0 0.0
    %309 = vmatprep.subr.mxu0 0.0
    %310 = vmatpush2.msra.mxu0 0.0
    %311 = vmatprep.subr.mxu0 0.0
    %312 = vmatpush2.msra.mxu0 0.0
    %313 = vmatprep.subr.mxu0 0.0
    %314 = vmatpush2.msra.mxu0 0.0
    %315 = vmatprep.subr.mxu0 0.0
    %316 = vmatpush2.msra.mxu0 0.0
    %317 = vmatprep.subr.mxu0 0.0
    %318 = vmatpush2.msra.mxu0 0.0
    %319 = vmatprep.subr.mxu0 0.0
    %320 = vmatpush2.msra.mxu0 0.0
    %321 = vmatprep.subr.mxu0 0.0
    %322 = vmatpush2.msra.mxu0 0.0
    %323 = vmatprep.subr.mxu0 0.0
    %324 = vmatpush2.msra.mxu0 0.0
    %325 = vmatprep.subr.mxu0 0.0
    %326 = vmatpush2.msra.mxu0 0.0
    %327 = vmatprep.subr.mxu0 0.0
    %328 = vmatpush2.msra.mxu0 0.0
    %329 = vmatprep.subr.mxu0 0.0
    %330 = vmatpush2.msra.mxu0 0.0
    %331 = vmatprep.subr.mxu0 0.0
    %332 = vmatpush2.msra.mxu0 0.0
    %333 = vmatprep.subr.mxu0 0.0
    %334 = vmatpush2.msra.mxu0 0.0
    %335 = vmatprep.subr.mxu0 0.0
    %336 = vmatpush2.msra.mxu0 0.0
    %337 = vmatprep.subr.mxu0 0.0
    %338 = vmatpush2.msra.mxu0 0.0
    %339 = vmatprep.mubr.f32.mxu0 0.0
    %340 = vmatmul.mubr.f32.gmra.mxu0 %v249
    %v341 = vpop.f32.mrf.mxu0
    %v342 = vadd.f32 %v273, %v341
    %v343 = vpop.f32.mrf.mxu0
    %344 = vdwg.mxu0
    %v345 = vmax.f32 %v342, 0.0
    %v346 = vld [vmem:[#allocation6] sm:$0xff]
    %v347 = vld [vmem:[#allocation6 + $0x8] sm:$0xff]
    %v348 = vld [vmem:[#allocation6 + $0x10] sm:$0xff]
    %v349 = vld [vmem:[#allocation6 + $0x18] sm:$0xff]
    %v350 = vld [vmem:[#allocation6 + $0x20] sm:$0xff]
    %v351 = vld [vmem:[#allocation6 + $0x28] sm:$0xff]
    %v352 = vld [vmem:[#allocation6 + $0x30] sm:$0xff]
    %v353 = vld [vmem:[#allocation6 + $0x38] sm:$0xff]
    %v354 = vld [vmem:[#allocation6 + $0x40] sm:$0xff]
    %v355 = vld [vmem:[#allocation6 + $0x48] sm:$0xff]
    %v356 = vld [vmem:[#allocation6 + $0x50] sm:$0xff]
    %v357 = vld [vmem:[#allocation6 + $0x58] sm:$0xff]
    %v358 = vld [vmem:[#allocation6 + $0x60] sm:$0xff]
    %v359 = vld [vmem:[#allocation6 + $0x68] sm:$0xff]
    %v360 = vld [vmem:[#allocation6 + $0x70] sm:$0xff]
    %v361 = vld [vmem:[#allocation6 + $0x78] sm:$0xff]
    %v362 = vld [vmem:[%s6] sm:$0x1]
    %v364 = vlaneseq
    %v365 = vshrl.u32 %v364, 7
    %v366 = vsub.s32 0, %v365
    %v367 = vrot.slane %v362, %v366
    %369 = vmatprep.subr.mxu0 0.0
    %370 = vmatpush1.msra.mxu0 %v361
    %371 = vmatprep.subr.mxu0 0.0
    %372 = vmatpush1.msra.mxu0 %v360
    %373 = vmatprep.subr.mxu0 0.0
    %374 = vmatpush1.msra.mxu0 %v359
    %375 = vmatprep.subr.mxu0 0.0
    %376 = vmatpush1.msra.mxu0 %v358
    %377 = vmatprep.subr.mxu0 0.0
    %378 = vmatpush1.msra.mxu0 %v357
    %379 = vmatprep.subr.mxu0 0.0
    %380 = vmatpush1.msra.mxu0 %v356
    %381 = vmatprep.subr.mxu0 0.0
    %382 = vmatpush1.msra.mxu0 %v355
    %383 = vmatprep.subr.mxu0 0.0
    %384 = vmatpush1.msra.mxu0 %v354
    %385 = vmatprep.subr.mxu0 0.0
    %386 = vmatpush1.msra.mxu0 %v353
    %387 = vmatprep.subr.mxu0 0.0
    %388 = vmatpush1.msra.mxu0 %v352
    %389 = vmatprep.subr.mxu0 0.0
    %390 = vmatpush1.msra.mxu0 %v351
    %391 = vmatprep.subr.mxu0 0.0
    %392 = vmatpush1.msra.mxu0 %v350
    %393 = vmatprep.subr.mxu0 0.0
    %394 = vmatpush1.msra.mxu0 %v349
    %395 = vmatprep.subr.mxu0 0.0
    %396 = vmatpush1.msra.mxu0 %v348
    %397 = vmatprep.subr.mxu0 0.0
    %398 = vmatpush1.msra.mxu0 %v347
    %399 = vmatprep.subr.mxu0 0.0
    %400 = vmatpush1.msra.mxu0 %v346
    %401 = vmatprep.subr.mxu0 0.0
    %402 = vmatpush2.msra.mxu0 0.0
    %403 = vmatprep.subr.mxu0 0.0
    %404 = vmatpush2.msra.mxu0 0.0
    %405 = vmatprep.subr.mxu0 0.0
    %406 = vmatpush2.msra.mxu0 0.0
    %407 = vmatprep.subr.mxu0 0.0
    %408 = vmatpush2.msra.mxu0 0.0
    %409 = vmatprep.subr.mxu0 0.0
    %410 = vmatpush2.msra.mxu0 0.0
    %411 = vmatprep.subr.mxu0 0.0
    %412 = vmatpush2.msra.mxu0 0.0
    %413 = vmatprep.subr.mxu0 0.0
    %414 = vmatpush2.msra.mxu0 0.0
    %415 = vmatprep.subr.mxu0 0.0
    %416 = vmatpush2.msra.mxu0 0.0
    %417 = vmatprep.subr.mxu0 0.0
    %418 = vmatpush2.msra.mxu0 0.0
    %419 = vmatprep.subr.mxu0 0.0
    %420 = vmatpush2.msra.mxu0 0.0
    %421 = vmatprep.subr.mxu0 0.0
    %422 = vmatpush2.msra.mxu0 0.0
    %423 = vmatprep.subr.mxu0 0.0
    %424 = vmatpush2.msra.mxu0 0.0
    %425 = vmatprep.subr.mxu0 0.0
    %426 = vmatpush2.msra.mxu0 0.0
    %427 = vmatprep.subr.mxu0 0.0
    %428 = vmatpush2.msra.mxu0 0.0
    %429 = vmatprep.subr.mxu0 0.0
    %430 = vmatpush2.msra.mxu0 0.0
    %431 = vmatprep.subr.mxu0 0.0
    %432 = vmatpush2.msra.mxu0 0.0
    %433 = vmatprep.mubr.f32.mxu0 0.0
    %434 = vmatmul.mubr.f32.gmra.mxu0 %v345
    %v435 = vpop.f32.mrf.mxu0
    %v436 = vadd.f32 %v367, %v435
    %v437 = vpop.f32.mrf.mxu0
    %438 = vdwg.mxu0
    %439 = vst [vmem:[%s7] sm:$0xff] %v436
    // Predicated region
    $region42: #{_qnet_forward_impl.1} parent=1 // pred_check
      _
    $region43: #{_qnet_forward_impl.1} parent=1 // pred_check_branch
      %441 = sbr.rel (0) target = $region45
    $region44: #{_qnet_forward_impl.1} parent=1 // pred_region
      _
    $region45: #{_qnet_forward_impl.1} parent=1 // pred_fallthru
      _
    // Predicated region
    $region46: #{_qnet_forward_impl.1} parent=1 // pred_check
      _
    $region47: #{_qnet_forward_impl.1} parent=1 // pred_check_branch
      %443 = sbr.rel (0) target = $region49
    $region48: #{_qnet_forward_impl.1} parent=1 // pred_region
      _
    $region49: #{_qnet_forward_impl.1} parent=1 // pred_fallthru
      _
    %444 = vsyncpa [#allocation3], 1
    %445 = vsyncpa [#allocation5], 1

// kernel: _qnet_forward_impl.1
$region0: #{_qnet_forward_impl.1}
  #allocation0 [shape = 'u32[]', space=smem, size = 0x4, offset = 0x4, fixed_abs, tag = 'smem constant byte address 0x4 - core index']
  #allocation1 [shape = 'u32[144,128]{1,0:T(1,128)}', space=vmem, size = 0x12000, scoped, tag = 'internal scratch']
  %s0 = inlined_call_operand.vmem [shape: f32[8,12], index: 0, kind: input, shape index: {}]
  %s1 = inlined_call_operand.hbm [shape: f32[12,128], index: 1, kind: input, shape index: {}]
  %s2 = inlined_call_operand.vmem [shape: f32[1,128], index: 2, kind: input, shape index: {}]
  %s3 = inlined_call_operand.hbm [shape: f32[2,128,128], index: 3, kind: input, shape index: {}]
  %s4 = inlined_call_operand.vmem [shape: f32[2,1,128], index: 4, kind: input, shape index: {}]
  %s5 = inlined_call_operand.hbm [shape: f32[128,128], index: 5, kind: input, shape index: {}]
  %s6 = inlined_call_operand.vmem [shape: f32[1,128], index: 6, kind: input, shape index: {}]
  %s7 = inlined_call_operand.vmem [shape: f32[8,128], index: 7, kind: output, shape index: {}]
  %s8 = sld [smem:[#allocation0]]
  $region50: #{_qnet_forward_impl.1} parent=0
    _
  %s10 = ssub.s32 1, %s8
  %s11 = scalar_select 0, %s10, %s8
  $region1: #{_qnet_forward_impl.1} parent=0
    #allocation2 [shape = 'u8[8192]{0}', space=vmem, size = 0x2000, scoped, tag = 'input window, operand 1, single buffered']
    #allocation3 [shape = 's32[1]{0}', space=sflag, size = 0x4, scoped, tag = 'scoped memory for _qnet_forward_impl.1']
    #allocation4 [shape = 'u8[131072]{0}', space=vmem, size = 0x20000, scoped, tag = 'input window, operand 3, single buffered']
    #allocation5 [shape = 's32[1]{0}', space=sflag, size = 0x4, scoped, tag = 'scoped memory for _qnet_forward_impl.1']
    #allocation6 [shape = 'u8[65536]{0}', space=vmem, size = 0x10000, scoped, tag = 'input window, operand 5, single buffered']
    %12 = vsyncpa [#allocation3], 0
    %13 = vsyncpa [#allocation5], 0
    // Predicated region
    $region2: #{_qnet_forward_impl.1} parent=1 // pred_check
      _
    $region3: #{_qnet_forward_impl.1} parent=1 // pred_check_branch
      %15 = sbr.rel (0) target = $region5
    $region4: #{_qnet_forward_impl.1} parent=1 // pred_region
      _
    $region5: #{_qnet_forward_impl.1} parent=1 // pred_fallthru
      _
    // Predicated region
    $region6: #{_qnet_forward_impl.1} parent=1 // pred_check
      _
    $region7: #{_qnet_forward_impl.1} parent=1 // pred_check_branch
      %17 = sbr.rel (0) target = $region9
    $region8: #{_qnet_forward_impl.1} parent=1 // pred_region
      %s19 = ssub.s32 256, 256
      %20 = vsyncadd [#allocation3], %s19
      %s21 = sshll.u32 [#allocation2], 4
      %s22 = int_to_ptr.vmem [resolvable:$true] %s21
      %27 = dma.hbm_to_vmem [thread:$0]  %s1, 256, %s22, [#allocation3], 128, 128, 8
    $region9: #{_qnet_forward_impl.1} parent=1 // pred_fallthru
      _
    // Predicated region
    $region10: #{_qnet_forward_impl.1} parent=1 // pred_check
      _
    $region11: #{_qnet_forward_impl.1} parent=1 // pred_check_branch
      %29 = sbr.rel (0) target = $region13
    $region12: #{_qnet_forward_impl.1} parent=1 // pred_region
      _
    $region13: #{_qnet_forward_impl.1} parent=1 // pred_fallthru
      _
    // Predicated region
    $region14: #{_qnet_forward_impl.1} parent=1 // pred_check
      _
    $region15: #{_qnet_forward_impl.1} parent=1 // pred_check_branch
      %31 = sbr.rel (0) target = $region17
    $region16: #{_qnet_forward_impl.1} parent=1 // pred_region
      %s33 = ssub.s32 4096, 4096
      %34 = vsyncadd [#allocation5], %s33
      %s35 = sshll.u32 [#allocation4], 4
      %s36 = int_to_ptr.vmem [resolvable:$true] %s35
      %41 = dma.hbm_to_vmem [thread:$0]  %s3, 4096, %s36, [#allocation5], 128, 128, 8
    $region17: #{_qnet_forward_impl.1} parent=1 // pred_fallthru
      _
    // Predicated region
    $region18: #{_qnet_forward_impl.1} parent=1 // pred_check
      _
    $region19: #{_qnet_forward_impl.1} parent=1 // pred_check_branch
      %43 = sbr.rel (0) target = $region21
    $region20: #{_qnet_forward_impl.1} parent=1 // pred_region
      _
    $region21: #{_qnet_forward_impl.1} parent=1 // pred_fallthru
      _
    // Predicated region
    $region22: #{_qnet_forward_impl.1} parent=1 // pred_check
      _
    $region23: #{_qnet_forward_impl.1} parent=1 // pred_check_branch
      %45 = sbr.rel (0) target = $region25
    $region24: #{_qnet_forward_impl.1} parent=1 // pred_region
      %s47 = ssub.s32 2048, 2048
      %48 = vsyncadd [#allocation5], %s47
      %s49 = sshll.u32 [#allocation6], 4
      %s50 = int_to_ptr.vmem [resolvable:$true] %s49
      %55 = dma.hbm_to_vmem [thread:$0]  %s5, 2048, %s50, [#allocation5], 128, 128, 8
    $region25: #{_qnet_forward_impl.1} parent=1 // pred_fallthru
      _
    // Predicated region
    $region26: #{_qnet_forward_impl.1} parent=1 // pred_check
      _
    $region27: #{_qnet_forward_impl.1} parent=1 // pred_check_branch
      %57 = sbr.rel (0) target = $region29
    $region28: #{_qnet_forward_impl.1} parent=1 // pred_region
      _
    $region29: #{_qnet_forward_impl.1} parent=1 // pred_fallthru
      _
    // Predicated region
    $region30: #{_qnet_forward_impl.1} parent=1 // pred_check
      _
    $region31: #{_qnet_forward_impl.1} parent=1 // pred_check_branch
      %59 = sbr.rel (0) target = $region33
    $region32: #{_qnet_forward_impl.1} parent=1 // pred_region
      %60 = dma.done [#allocation3], 256
    $region33: #{_qnet_forward_impl.1} parent=1 // pred_fallthru
      _
    // Predicated region
    $region34: #{_qnet_forward_impl.1} parent=1 // pred_check
      _
    $region35: #{_qnet_forward_impl.1} parent=1 // pred_check_branch
      %62 = sbr.rel (0) target = $region37
    $region36: #{_qnet_forward_impl.1} parent=1 // pred_region
      %63 = dma.done [#allocation5], 4096
    $region37: #{_qnet_forward_impl.1} parent=1 // pred_fallthru
      _
    // Predicated region
    $region38: #{_qnet_forward_impl.1} parent=1 // pred_check
      _
    $region39: #{_qnet_forward_impl.1} parent=1 // pred_check_branch
      %65 = sbr.rel (0) target = $region41
    $region40: #{_qnet_forward_impl.1} parent=1 // pred_region
      %66 = dma.done [#allocation5], 2048
    $region41: #{_qnet_forward_impl.1} parent=1 // pred_fallthru
      _
    %v67 = vld [vmem:[%s0] sm:$0xff]
    %v68 = vld [vmem:[#allocation2] sm:$0xff]
    %v69 = vld [vmem:[#allocation2 + $0x8] sm:$0xf]
    %v70 = vld [vmem:[%s2] sm:$0x1]
    %v72 = vlaneseq
    %v73 = vshrl.u32 %v72, 7
    %v74 = vsub.s32 0, %v73
    %v75 = vrot.slane %v70, %v74
    %vm77 = vcmask 97280
    %v79 = vsel %vm77, %v67, 0
    %vm81 = vcmask 1043456
    %v83 = vsel %vm81, %v69, 0
    %85 = vmatprep.subr.mxu0 0.0
    %86 = vmatpush1.msra.mxu0 0.0
    %87 = vmatprep.subr.mxu0 0.0
    %88 = vmatpush1.msra.mxu0 0.0
    %89 = vmatprep.subr.mxu0 0.0
    %90 = vmatpush1.msra.mxu0 0.0
    %91 = vmatprep.subr.mxu0 0.0
    %92 = vmatpush1.msra.mxu0 0.0
    %93 = vmatprep.subr.mxu0 0.0
    %94 = vmatpush1.msra.mxu0 0.0
    %95 = vmatprep.subr.mxu0 0.0
    %96 = vmatpush1.msra.mxu0 0.0
    %97 = vmatprep.subr.mxu0 0.0
    %98 = vmatpush1.msra.mxu0 0.0
    %99 = vmatprep.subr.mxu0 0.0
    %100 = vmatpush1.msra.mxu0 0.0
    %101 = vmatprep.subr.mxu0 0.0
    %102 = vmatpush1.msra.mxu0 0.0
    %103 = vmatprep.subr.mxu0 0.0
    %104 = vmatpush1.msra.mxu0 0.0
    %105 = vmatprep.subr.mxu0 0.0
    %106 = vmatpush1.msra.mxu0 0.0
    %107 = vmatprep.subr.mxu0 0.0
    %108 = vmatpush1.msra.mxu0 0.0
    %109 = vmatprep.subr.mxu0 0.0
    %110 = vmatpush1.msra.mxu0 0.0
    %111 = vmatprep.subr.mxu0 0.0
    %112 = vmatpush1.msra.mxu0 0.0
    %113 = vmatprep.subr.mxu0 0.0
    %114 = vmatpush1.msra.mxu0 %v83
    %115 = vmatprep.subr.mxu0 0.0
    %116 = vmatpush1.msra.mxu0 %v68
    %117 = vmatprep.subr.mxu0 0.0
    %118 = vmatpush2.msra.mxu0 0.0
    %119 = vmatprep.subr.mxu0 0.0
    %120 = vmatpush2.msra.mxu0 0.0
    %121 = vmatprep.subr.mxu0 0.0
    %122 = vmatpush2.msra.mxu0 0.0
    %123 = vmatprep.subr.mxu0 0.0
    %124 = vmatpush2.msra.mxu0 0.0
    %125 = vmatprep.subr.mxu0 0.0
    %126 = vmatpush2.msra.mxu0 0.0
    %127 = vmatprep.subr.mxu0 0.0
    %128 = vmatpush2.msra.mxu0 0.0
    %129 = vmatprep.subr.mxu0 0.0
    %130 = vmatpush2.msra.mxu0 0.0
    %131 = vmatprep.subr.mxu0 0.0
    %132 = vmatpush2.msra.mxu0 0.0
    %133 = vmatprep.subr.mxu0 0.0
    %134 = vmatpush2.msra.mxu0 0.0
    %135 = vmatprep.subr.mxu0 0.0
    %136 = vmatpush2.msra.mxu0 0.0
    %137 = vmatprep.subr.mxu0 0.0
    %138 = vmatpush2.msra.mxu0 0.0
    %139 = vmatprep.subr.mxu0 0.0
    %140 = vmatpush2.msra.mxu0 0.0
    %141 = vmatprep.subr.mxu0 0.0
    %142 = vmatpush2.msra.mxu0 0.0
    %143 = vmatprep.subr.mxu0 0.0
    %144 = vmatpush2.msra.mxu0 0.0
    %145 = vmatprep.subr.mxu0 0.0
    %146 = vmatpush2.msra.mxu0 0.0
    %147 = vmatprep.subr.mxu0 0.0
    %148 = vmatpush2.msra.mxu0 0.0
    %149 = vmatprep.mubr.f32.mxu0 0.0
    %150 = vmatmul.mubr.f32.gmra.mxu0 %v79
    %v151 = vpop.f32.mrf.mxu0
    %v152 = vadd.f32 %v75, %v151
    %v153 = vpop.f32.mrf.mxu0
    %154 = vdwg.mxu0
    %v155 = vmax.f32 %v152, 0.0
    %v156 = vld [vmem:[#allocation4] sm:$0xff]
    %v157 = vld [vmem:[#allocation4 + $0x8] sm:$0xff]
    %v158 = vld [vmem:[#allocation4 + $0x10] sm:$0xff]
    %v159 = vld [vmem:[#allocation4 + $0x18] sm:$0xff]
    %v160 = vld [vmem:[#allocation4 + $0x20] sm:$0xff]
    %v161 = vld [vmem:[#allocation4 + $0x28] sm:$0xff]
    %v162 = vld [vmem:[#allocation4 + $0x30] sm:$0xff]
    %v163 = vld [vmem:[#allocation4 + $0x38] sm:$0xff]
    %v164 = vld [vmem:[#allocation4 + $0x40] sm:$0xff]
    %v165 = vld [vmem:[#allocation4 + $0x48] sm:$0xff]
    %v166 = vld [vmem:[#allocation4 + $0x50] sm:$0xff]
    %v167 = vld [vmem:[#allocation4 + $0x58] sm:$0xff]
    %v168 = vld [vmem:[#allocation4 + $0x60] sm:$0xff]
    %v169 = vld [vmem:[#allocation4 + $0x68] sm:$0xff]
    %v170 = vld [vmem:[#allocation4 + $0x70] sm:$0xff]
    %v171 = vld [vmem:[#allocation4 + $0x78] sm:$0xff]
    %v172 = vld [vmem:[%s4] sm:$0x1]
    %v174 = vlaneseq
    %v175 = vshrl.u32 %v174, 7
    %v176 = vsub.s32 0, %v175
    %v177 = vrot.slane %v172, %v176
    %179 = vmatprep.subr.mxu0 0.0
    %180 = vmatpush1.msra.mxu0 %v171
    %181 = vmatprep.subr.mxu0 0.0
    %182 = vmatpush1.msra.mxu0 %v170
    %183 = vmatprep.subr.mxu0 0.0
    %184 = vmatpush1.msra.mxu0 %v169
    %185 = vmatprep.subr.mxu0 0.0
    %186 = vmatpush1.msra.mxu0 %v168
    %187 = vmatprep.subr.mxu0 0.0
    %188 = vmatpush1.msra.mxu0 %v167
    %189 = vmatprep.subr.mxu0 0.0
    %190 = vmatpush1.msra.mxu0 %v166
    %191 = vmatprep.subr.mxu0 0.0
    %192 = vmatpush1.msra.mxu0 %v165
    %193 = vmatprep.subr.mxu0 0.0
    %194 = vmatpush1.msra.mxu0 %v164
    %195 = vmatprep.subr.mxu0 0.0
    %196 = vmatpush1.msra.mxu0 %v163
    %197 = vmatprep.subr.mxu0 0.0
    %198 = vmatpush1.msra.mxu0 %v162
    %199 = vmatprep.subr.mxu0 0.0
    %200 = vmatpush1.msra.mxu0 %v161
    %201 = vmatprep.subr.mxu0 0.0
    %202 = vmatpush1.msra.mxu0 %v160
    %203 = vmatprep.subr.mxu0 0.0
    %204 = vmatpush1.msra.mxu0 %v159
    %205 = vmatprep.subr.mxu0 0.0
    %206 = vmatpush1.msra.mxu0 %v158
    %207 = vmatprep.subr.mxu0 0.0
    %208 = vmatpush1.msra.mxu0 %v157
    %209 = vmatprep.subr.mxu0 0.0
    %210 = vmatpush1.msra.mxu0 %v156
    %211 = vmatprep.subr.mxu0 0.0
    %212 = vmatpush2.msra.mxu0 0.0
    %213 = vmatprep.subr.mxu0 0.0
    %214 = vmatpush2.msra.mxu0 0.0
    %215 = vmatprep.subr.mxu0 0.0
    %216 = vmatpush2.msra.mxu0 0.0
    %217 = vmatprep.subr.mxu0 0.0
    %218 = vmatpush2.msra.mxu0 0.0
    %219 = vmatprep.subr.mxu0 0.0
    %220 = vmatpush2.msra.mxu0 0.0
    %221 = vmatprep.subr.mxu0 0.0
    %222 = vmatpush2.msra.mxu0 0.0
    %223 = vmatprep.subr.mxu0 0.0
    %224 = vmatpush2.msra.mxu0 0.0
    %225 = vmatprep.subr.mxu0 0.0
    %226 = vmatpush2.msra.mxu0 0.0
    %227 = vmatprep.subr.mxu0 0.0
    %228 = vmatpush2.msra.mxu0 0.0
    %229 = vmatprep.subr.mxu0 0.0
    %230 = vmatpush2.msra.mxu0 0.0
    %231 = vmatprep.subr.mxu0 0.0
    %232 = vmatpush2.msra.mxu0 0.0
    %233 = vmatprep.subr.mxu0 0.0
    %234 = vmatpush2.msra.mxu0 0.0
    %235 = vmatprep.subr.mxu0 0.0
    %236 = vmatpush2.msra.mxu0 0.0
    %237 = vmatprep.subr.mxu0 0.0
    %238 = vmatpush2.msra.mxu0 0.0
    %239 = vmatprep.subr.mxu0 0.0
    %240 = vmatpush2.msra.mxu0 0.0
    %241 = vmatprep.subr.mxu0 0.0
    %242 = vmatpush2.msra.mxu0 0.0
    %243 = vmatprep.mubr.f32.mxu0 0.0
    %244 = vmatmul.mubr.f32.gmra.mxu0 %v155
    %v245 = vpop.f32.mrf.mxu0
    %v246 = vadd.f32 %v177, %v245
    %v247 = vpop.f32.mrf.mxu0
    %248 = vdwg.mxu0
    %v249 = vmax.f32 %v246, 0.0
    %s250 = scalar_lea.vmem [#allocation4], 128
    %v251 = vld [vmem:[%s250] sm:$0xff]
    %v252 = vld [vmem:[%s250 + $0x8] sm:$0xff]
    %v253 = vld [vmem:[%s250 + $0x10] sm:$0xff]
    %v254 = vld [vmem:[%s250 + $0x18] sm:$0xff]
    %v255 = vld [vmem:[%s250 + $0x20] sm:$0xff]
    %v256 = vld [vmem:[%s250 + $0x28] sm:$0xff]
    %v257 = vld [vmem:[%s250 + $0x30] sm:$0xff]
    %v258 = vld [vmem:[%s250 + $0x38] sm:$0xff]
    %v259 = vld [vmem:[%s250 + $0x40] sm:$0xff]
    %v260 = vld [vmem:[%s250 + $0x48] sm:$0xff]
    %v261 = vld [vmem:[%s250 + $0x50] sm:$0xff]
    %v262 = vld [vmem:[%s250 + $0x58] sm:$0xff]
    %v263 = vld [vmem:[%s250 + $0x60] sm:$0xff]
    %v264 = vld [vmem:[%s250 + $0x68] sm:$0xff]
    %v265 = vld [vmem:[%s250 + $0x70] sm:$0xff]
    %v266 = vld [vmem:[%s250 + $0x78] sm:$0xff]
    %s267 = scalar_lea.vmem %s4, 1
    %v268 = vld [vmem:[%s267] sm:$0x1]
    %v270 = vlaneseq
    %v271 = vshrl.u32 %v270, 7
    %v272 = vsub.s32 0, %v271
    %v273 = vrot.slane %v268, %v272
    %275 = vmatprep.subr.mxu0 0.0
    %276 = vmatpush1.msra.mxu0 %v266
    %277 = vmatprep.subr.mxu0 0.0
    %278 = vmatpush1.msra.mxu0 %v265
    %279 = vmatprep.subr.mxu0 0.0
    %280 = vmatpush1.msra.mxu0 %v264
    %281 = vmatprep.subr.mxu0 0.0
    %282 = vmatpush1.msra.mxu0 %v263
    %283 = vmatprep.subr.mxu0 0.0
    %284 = vmatpush1.msra.mxu0 %v262
    %285 = vmatprep.subr.mxu0 0.0
    %286 = vmatpush1.msra.mxu0 %v261
    %287 = vmatprep.subr.mxu0 0.0
    %288 = vmatpush1.msra.mxu0 %v260
    %289 = vmatprep.subr.mxu0 0.0
    %290 = vmatpush1.msra.mxu0 %v259
    %291 = vmatprep.subr.mxu0 0.0
    %292 = vmatpush1.msra.mxu0 %v258
    %293 = vmatprep.subr.mxu0 0.0
    %294 = vmatpush1.msra.mxu0 %v257
    %295 = vmatprep.subr.mxu0 0.0
    %296 = vmatpush1.msra.mxu0 %v256
    %297 = vmatprep.subr.mxu0 0.0
    %298 = vmatpush1.msra.mxu0 %v255
    %299 = vmatprep.subr.mxu0 0.0
    %300 = vmatpush1.msra.mxu0 %v254
    %301 = vmatprep.subr.mxu0 0.0
    %302 = vmatpush1.msra.mxu0 %v253
    %303 = vmatprep.subr.mxu0 0.0
    %304 = vmatpush1.msra.mxu0 %v252
    %305 = vmatprep.subr.mxu0 0.0
    %306 = vmatpush1.msra.mxu0 %v251
    %307 = vmatprep.subr.mxu0 0.0
    %308 = vmatpush2.msra.mxu0 0.0
    %309 = vmatprep.subr.mxu0 0.0
    %310 = vmatpush2.msra.mxu0 0.0
    %311 = vmatprep.subr.mxu0 0.0
    %312 = vmatpush2.msra.mxu0 0.0
    %313 = vmatprep.subr.mxu0 0.0
    %314 = vmatpush2.msra.mxu0 0.0
    %315 = vmatprep.subr.mxu0 0.0
    %316 = vmatpush2.msra.mxu0 0.0
    %317 = vmatprep.subr.mxu0 0.0
    %318 = vmatpush2.msra.mxu0 0.0
    %319 = vmatprep.subr.mxu0 0.0
    %320 = vmatpush2.msra.mxu0 0.0
    %321 = vmatprep.subr.mxu0 0.0
    %322 = vmatpush2.msra.mxu0 0.0
    %323 = vmatprep.subr.mxu0 0.0
    %324 = vmatpush2.msra.mxu0 0.0
    %325 = vmatprep.subr.mxu0 0.0
    %326 = vmatpush2.msra.mxu0 0.0
    %327 = vmatprep.subr.mxu0 0.0
    %328 = vmatpush2.msra.mxu0 0.0
    %329 = vmatprep.subr.mxu0 0.0
    %330 = vmatpush2.msra.mxu0 0.0
    %331 = vmatprep.subr.mxu0 0.0
    %332 = vmatpush2.msra.mxu0 0.0
    %333 = vmatprep.subr.mxu0 0.0
    %334 = vmatpush2.msra.mxu0 0.0
    %335 = vmatprep.subr.mxu0 0.0
    %336 = vmatpush2.msra.mxu0 0.0
    %337 = vmatprep.subr.mxu0 0.0
    %338 = vmatpush2.msra.mxu0 0.0
    %339 = vmatprep.mubr.f32.mxu0 0.0
    %340 = vmatmul.mubr.f32.gmra.mxu0 %v249
    %v341 = vpop.f32.mrf.mxu0
    %v342 = vadd.f32 %v273, %v341
    %v343 = vpop.f32.mrf.mxu0
    %344 = vdwg.mxu0
    %v345 = vmax.f32 %v342, 0.0
    %v346 = vld [vmem:[#allocation6] sm:$0xff]
    %v347 = vld [vmem:[#allocation6 + $0x8] sm:$0xff]
    %v348 = vld [vmem:[#allocation6 + $0x10] sm:$0xff]
    %v349 = vld [vmem:[#allocation6 + $0x18] sm:$0xff]
    %v350 = vld [vmem:[#allocation6 + $0x20] sm:$0xff]
    %v351 = vld [vmem:[#allocation6 + $0x28] sm:$0xff]
    %v352 = vld [vmem:[#allocation6 + $0x30] sm:$0xff]
    %v353 = vld [vmem:[#allocation6 + $0x38] sm:$0xff]
    %v354 = vld [vmem:[#allocation6 + $0x40] sm:$0xff]
    %v355 = vld [vmem:[#allocation6 + $0x48] sm:$0xff]
    %v356 = vld [vmem:[#allocation6 + $0x50] sm:$0xff]
    %v357 = vld [vmem:[#allocation6 + $0x58] sm:$0xff]
    %v358 = vld [vmem:[#allocation6 + $0x60] sm:$0xff]
    %v359 = vld [vmem:[#allocation6 + $0x68] sm:$0xff]
    %v360 = vld [vmem:[#allocation6 + $0x70] sm:$0xff]
    %v361 = vld [vmem:[#allocation6 + $0x78] sm:$0xff]
    %v362 = vld [vmem:[%s6] sm:$0x1]
    %v364 = vlaneseq
    %v365 = vshrl.u32 %v364, 7
    %v366 = vsub.s32 0, %v365
    %v367 = vrot.slane %v362, %v366
    %369 = vmatprep.subr.mxu0 0.0
    %370 = vmatpush1.msra.mxu0 %v361
    %371 = vmatprep.subr.mxu0 0.0
    %372 = vmatpush1.msra.mxu0 %v360
    %373 = vmatprep.subr.mxu0 0.0
    %374 = vmatpush1.msra.mxu0 %v359
    %375 = vmatprep.subr.mxu0 0.0
    %376 = vmatpush1.msra.mxu0 %v358
    %377 = vmatprep.subr.mxu0 0.0
    %378 = vmatpush1.msra.mxu0 %v357
    %379 = vmatprep.subr.mxu0 0.0
    %380 = vmatpush1.msra.mxu0 %v356
    %381 = vmatprep.subr.mxu0 0.0
    %382 = vmatpush1.msra.mxu0 %v355
    %383 = vmatprep.subr.mxu0 0.0
    %384 = vmatpush1.msra.mxu0 %v354
    %385 = vmatprep.subr.mxu0 0.0
    %386 = vmatpush1.msra.mxu0 %v353
    %387 = vmatprep.subr.mxu0 0.0
    %388 = vmatpush1.msra.mxu0 %v352
    %389 = vmatprep.subr.mxu0 0.0
    %390 = vmatpush1.msra.mxu0 %v351
    %391 = vmatprep.subr.mxu0 0.0
    %392 = vmatpush1.msra.mxu0 %v350
    %393 = vmatprep.subr.mxu0 0.0
    %394 = vmatpush1.msra.mxu0 %v349
    %395 = vmatprep.subr.mxu0 0.0
    %396 = vmatpush1.msra.mxu0 %v348
    %397 = vmatprep.subr.mxu0 0.0
    %398 = vmatpush1.msra.mxu0 %v347
    %399 = vmatprep.subr.mxu0 0.0
    %400 = vmatpush1.msra.mxu0 %v346
    %401 = vmatprep.subr.mxu0 0.0
    %402 = vmatpush2.msra.mxu0 0.0
    %403 = vmatprep.subr.mxu0 0.0
    %404 = vmatpush2.msra.mxu0 0.0
    %405 = vmatprep.subr.mxu0 0.0
    %406 = vmatpush2.msra.mxu0 0.0
    %407 = vmatprep.subr.mxu0 0.0
    %408 = vmatpush2.msra.mxu0 0.0
    %409 = vmatprep.subr.mxu0 0.0
    %410 = vmatpush2.msra.mxu0 0.0
    %411 = vmatprep.subr.mxu0 0.0
    %412 = vmatpush2.msra.mxu0 0.0
    %413 = vmatprep.subr.mxu0 0.0
    %414 = vmatpush2.msra.mxu0 0.0
    %415 = vmatprep.subr.mxu0 0.0
    %416 = vmatpush2.msra.mxu0 0.0
    %417 = vmatprep.subr.mxu0 0.0
    %418 = vmatpush2.msra.mxu0 0.0
    %419 = vmatprep.subr.mxu0 0.0
    %420 = vmatpush2.msra.mxu0 0.0
    %421 = vmatprep.subr.mxu0 0.0
    %422 = vmatpush2.msra.mxu0 0.0
    %423 = vmatprep.subr.mxu0 0.0
    %424 = vmatpush2.msra.mxu0 0.0
    %425 = vmatprep.subr.mxu0 0.0
    %426 = vmatpush2.msra.mxu0 0.0
    %427 = vmatprep.subr.mxu0 0.0
    %428 = vmatpush2.msra.mxu0 0.0
    %429 = vmatprep.subr.mxu0 0.0
    %430 = vmatpush2.msra.mxu0 0.0
    %431 = vmatprep.subr.mxu0 0.0
    %432 = vmatpush2.msra.mxu0 0.0
    %433 = vmatprep.mubr.f32.mxu0 0.0
    %434 = vmatmul.mubr.f32.gmra.mxu0 %v345
    %v435 = vpop.f32.mrf.mxu0
    %v436 = vadd.f32 %v367, %v435
    %v437 = vpop.f32.mrf.mxu0
    %438 = vdwg.mxu0
    %439 = vst [vmem:[%s7] sm:$0xff] %v436
    // Predicated region
    $region42: #{_qnet_forward_impl.1} parent=1 // pred_check
      _
    $region43: #{_qnet_forward_impl.1} parent=1 // pred_check_branch
      %441 = sbr.rel (0) target = $region45
    $region44: #{_qnet_forward_impl.1} parent=1 // pred_region
      _
    $region45: #{_qnet_forward_impl.1} parent=1 // pred_fallthru
      _
    // Predicated region
    $region46: #{_qnet_forward_impl.1} parent=1 // pred_check
      _
    $region47: #{_qnet_forward_impl.1} parent=1 // pred_check_branch
      %443 = sbr.rel (0) target = $region49
    $region48: #{_qnet_forward_impl.1} parent=1 // pred_region
      _
    $region49: #{_qnet_forward_impl.1} parent=1 // pred_fallthru
      _
    %444 = vsyncpa [#allocation3], 1
    %445 = vsyncpa [#allocation5], 1

</llo_original>
